<compile_context>
chip_gen: v5e
topology: v5e:2x2
jax: 0.10.0
libtpu: 0.0.40
codegen_flags: <defaults>
</compile_context>

<pallas_src>
import functools

import jax
import jax.numpy as jnp
from jax.experimental import pallas as pl
from jax.experimental.pallas import tpu as pltpu


def _round_up(x, m):
    return (x + m - 1) // m * m


def _wfocal_mae_kernel(*refs, beta, gamma, activate, has_weights, count_nonzero):
    # Ref order: inputs (x, t, [w]), outputs (loss_out, [cnt_out]), scratch (acc, [cnt_acc]).
    idx = 0
    x_ref = refs[idx]; idx += 1
    t_ref = refs[idx]; idx += 1
    w_ref = None
    if has_weights:
        w_ref = refs[idx]; idx += 1
    out_ref = refs[idx]; idx += 1
    cnt_out_ref = None
    if count_nonzero:
        cnt_out_ref = refs[idx]; idx += 1
    acc_ref = refs[idx]; idx += 1
    cnt_acc_ref = None
    if count_nonzero:
        cnt_acc_ref = refs[idx]; idx += 1

    j = pl.program_id(1)  # inner reduction axis ("arbitrary")

    @pl.when(j == 0)
    def _():
        acc_ref[...] = jnp.zeros_like(acc_ref)
        if count_nonzero:
            cnt_acc_ref[...] = jnp.zeros_like(cnt_acc_ref)

    x = x_ref[...].astype(jnp.float32)   # (TR, LW), lane-dense
    t = t_ref[...].astype(jnp.float32)
    diff = jnp.abs(x - t)

    if activate == "tanh":
        mod = jnp.tanh(beta * diff)                              # EUP
    else:
        # 2*sigmoid(z) - 1 with z = beta*diff >= 0  (exp(-z) <= 1, numerically safe)
        mod = 2.0 * (1.0 / (1.0 + jnp.exp(-beta * diff))) - 1.0  # EUP exp + recip
    if gamma != 1:
        mod = mod ** gamma

    loss = diff * mod
    if has_weights:
        loss = loss * w_ref[...].astype(jnp.float32)

    # Fold row groups into a vreg-shaped (8, LW) partial with pure VPU adds;
    # no per-step cross-lane (XLU) reduction and no lane-width-1 stores.
    tr, lw = loss.shape
    acc_ref[...] += jnp.sum(loss.reshape(tr // 8, 8, lw), axis=0)
    if count_nonzero:
        nz = (t != 0.0).astype(jnp.float32)
        cnt_acc_ref[...] += jnp.sum(nz.reshape(tr // 8, 8, lw), axis=0)

    @pl.when(j == pl.num_programs(1) - 1)
    def _():
        out_ref[0] = acc_ref[...]        # lane-dense partial slab for this chunk
        if count_nonzero:
            cnt_out_ref[0] = cnt_acc_ref[...]


def wfocal_mae(inputs, targets, activate="sigmoid", beta=0.2, gamma=1,
               weights=None, exclude_zeros=False, *,
               lane_width=512, tile_rows=1024, num_chunks=2):
    """Pallas port of WFocalMAE.forward."""
    assert inputs.shape == targets.shape
    total = int(inputs.size)

    x = jnp.asarray(inputs).reshape(-1)      # keep native dtype; cast in-kernel
    t = jnp.asarray(targets).reshape(-1)

    has_weights = weights is not None
    if has_weights:
        # TODO(synk): torch expand_as is a view; here the broadcast weights are
        # materialized in HBM before the kernel (general broadcast patterns are
        # hard to express in the flattened lane-dense layout).
        w = jnp.broadcast_to(jnp.asarray(weights), inputs.shape).reshape(-1)

    # Lane-dense 2D layout: (rows, lane_width), lane_width a multiple of 128.
    rows = pl.cdiv(total, lane_width)
    tr = min(tile_rows, _round_up(rows, 16))     # row tile, multiple of 16 (bf16-safe)
    n_blocks = pl.cdiv(rows, tr)
    nc = max(1, min(num_chunks, n_blocks))       # parallel chunks (v7x megacore)
    steps = pl.cdiv(n_blocks, nc)                # reduction steps per chunk
    rows_padded = nc * steps * tr
    padded = rows_padded * lane_width

    if padded != total:
        pad = padded - total
        x = jnp.pad(x, (0, pad))                 # zero pad contributes 0 to sum & count
        t = jnp.pad(t, (0, pad))
        if has_weights:
            w = jnp.pad(w, (0, pad))

    block_spec = lambda: pl.BlockSpec((tr, lane_width), lambda c, j: (c * steps + j, 0))
    operands = [x.reshape(rows_padded, lane_width), t.reshape(rows_padded, lane_width)]
    in_specs = [block_spec(), block_spec()]
    if has_weights:
        operands.append(w.reshape(rows_padded, lane_width))
        in_specs.append(block_spec())

    slab = jax.ShapeDtypeStruct((nc, 8, lane_width), jnp.float32)
    slab_spec = lambda: pl.BlockSpec((1, 8, lane_width), lambda c, j: (c, 0, 0))
    if exclude_zeros:
        out_shape = (slab, slab)
        out_specs = (slab_spec(), slab_spec())
        scratch = [pltpu.VMEM((8, lane_width), jnp.float32),
                   pltpu.VMEM((8, lane_width), jnp.float32)]
    else:
        out_shape = slab
        out_specs = slab_spec()
        scratch = [pltpu.VMEM((8, lane_width), jnp.float32)]

    kernel = functools.partial(
        _wfocal_mae_kernel, beta=float(beta), gamma=gamma, activate=activate,
        has_weights=has_weights, count_nonzero=bool(exclude_zeros))

    in_bytes = sum(int(o.size) * o.dtype.itemsize for o in operands)
    out_bytes = (2 if exclude_zeros else 1) * nc * 8 * lane_width * 4

    results = pl.pallas_call(
        kernel,
        out_shape=out_shape,
        grid_spec=pltpu.PrefetchScalarGridSpec(
            num_scalar_prefetch=0,
            grid=(nc, steps),
            in_specs=in_specs,
            out_specs=out_specs,
            scratch_shapes=scratch,
        ),
        compiler_params=pltpu.CompilerParams(
            dimension_semantics=("parallel", "arbitrary"),
            vmem_limit_bytes=32 * 1024 * 1024,
        ),
        cost_estimate=pl.CostEstimate(
            flops=10 * padded,
            transcendentals=padded,
            bytes_accessed=in_bytes + out_bytes,
        ),
    )(*operands)

    if exclude_zeros:
        loss_part, cnt_part = results
        return jnp.sum(loss_part) / jnp.sum(cnt_part)
    return jnp.sum(results) / jnp.float32(total)


def _reference_wfocal_mae(inputs, targets, activate="sigmoid", beta=0.2, gamma=1,
                          weights=None, exclude_zeros=False):
    loss = jnp.abs(inputs - targets)
    if activate == "tanh":
        mod = jnp.tanh(beta * jnp.abs(inputs - targets)) ** gamma
    else:
        mod = (2.0 * jax.nn.sigmoid(beta * jnp.abs(inputs - targets)) - 1.0) ** gamma
    loss = loss * mod
    if weights is not None:
        loss = loss * jnp.broadcast_to(weights, loss.shape)
    if exclude_zeros:
        return jnp.sum(loss) / jnp.count_nonzero(targets)
    return jnp.mean(loss)


if __name__ == "__main__":
    N, C, H, W = 2, 4, 16, 16
    key = jax.random.PRNGKey(0)
    ki, kt, kz, kw = jax.random.split(key, 4)
    inputs = jax.random.normal(ki, (N, C, H, W), dtype=jnp.float32)
    targets = jax.random.normal(kt, (N, C, H, W), dtype=jnp.float32)

    # 1) Default path: sigmoid focal modulation, beta=0.2, gamma=1, mean reduction.
    loss = jax.block_until_ready(wfocal_mae(inputs, targets))
    ref = jax.block_until_ready(_reference_wfocal_mae(inputs, targets))
    assert jnp.allclose(loss, ref, rtol=1e-5, atol=1e-6), (loss, ref)

    # 2) tanh modulation with gamma=2.
    loss_t = jax.block_until_ready(
        wfocal_mae(inputs, targets, activate="tanh", beta=0.3, gamma=2))
    ref_t = jax.block_until_ready(
        _reference_wfocal_mae(inputs, targets, activate="tanh", beta=0.3, gamma=2))
    assert jnp.allclose(loss_t, ref_t, rtol=1e-5, atol=1e-6), (loss_t, ref_t)

    # 3) exclude_zeros with sparse targets (count of non-zero targets done in-kernel).
    targets_z = targets * (jax.random.uniform(kz, (N, C, H, W)) > 0.4)
    loss_z = jax.block_until_ready(wfocal_mae(inputs, targets_z, exclude_zeros=True))
    ref_z = jax.block_until_ready(
        _reference_wfocal_mae(inputs, targets_z, exclude_zeros=True))
    assert jnp.allclose(loss_z, ref_z, rtol=1e-5, atol=1e-6), (loss_z, ref_z)

    # 4) Broadcast weights (per-channel), weights.expand_as path.
    weights = jax.random.uniform(kw, (1, C, 1, 1), dtype=jnp.float32)
    loss_w = jax.block_until_ready(wfocal_mae(inputs, targets, weights=weights))
    ref_w = jax.block_until_ready(
        _reference_wfocal_mae(inputs, targets, weights=weights))
    assert jnp.allclose(loss_w, ref_w, rtol=1e-5, atol=1e-6), (loss_w, ref_w)

    print("KERNEL_OK")
</pallas_src>

<mosaic_0001>
module attributes {stable_mosaic.version = 11 : i64} {
  func.func @_wfocal_mae_kernel(%arg0: i32, %arg1: i32, %arg2: memref<16x512xf32, #tpu.memory_space<vmem>>, %arg3: memref<16x512xf32, #tpu.memory_space<vmem>>, %arg4: memref<1x8x512xf32, #tpu.memory_space<vmem>>, %arg5: memref<8x512xf32, #tpu.memory_space<vmem>>) attributes {dimension_semantics = [#tpu.dimension_semantics<parallel>, #tpu.dimension_semantics<arbitrary>], iteration_bounds = array<i64: 1, 1>, scalar_prefetch = 0 : i64, scratch_operands = 1 : i64, tpu.core_type = #tpu.core_type<tc>, window_params = [{transform_indices = @transform_0, window_bounds = array<i64: 16, 512>}, {transform_indices = @transform_1, window_bounds = array<i64: 16, 512>}, {transform_indices = @transform_2, window_bounds = array<i64: 1, 8, 512>}]} {
    %c0_i32 = arith.constant 0 : i32
    %0 = arith.cmpi eq, %arg1, %c0_i32 : i32
    %1 = arith.extui %0 : i1 to i32
    %c0_i32_0 = arith.constant 0 : i32
    %2 = arith.cmpi ne, %1, %c0_i32_0 : i32
    scf.if %2 {
      %cst_15 = arith.constant 0.000000e+00 : f32
      %27 = vector.broadcast %cst_15 : f32 to vector<8x512xf32>
      %c0_16 = arith.constant 0 : index
      %c0_17 = arith.constant 0 : index
      %28 = vector.load %arg5[%c0_16, %c0_17] : memref<8x512xf32, #tpu.memory_space<vmem>>, vector<8x512xf32>
      tpu.vector_store %arg5[%c0_16, %c0_17], %27 {strides = array<i32>} : memref<8x512xf32, #tpu.memory_space<vmem>>, vector<8x512xf32>,
    } else {
    }
    %c0 = arith.constant 0 : index
    %c0_1 = arith.constant 0 : index
    %3 = vector.load %arg2[%c0, %c0_1] : memref<16x512xf32, #tpu.memory_space<vmem>>, vector<16x512xf32>
    %c0_2 = arith.constant 0 : index
    %c0_3 = arith.constant 0 : index
    %4 = vector.load %arg3[%c0_2, %c0_3] : memref<16x512xf32, #tpu.memory_space<vmem>>, vector<16x512xf32>
    %5 = arith.subf %3, %4 : vector<16x512xf32>
    %6 = math.absf %5 : vector<16x512xf32>
    %cst = arith.constant -2.000000e-01 : f32
    %7 = vector.broadcast %cst : f32 to vector<16x512xf32>
    %8 = arith.mulf %7, %6 : vector<16x512xf32>
    %9 = math.exp %8 : vector<16x512xf32>
    %cst_4 = arith.constant 1.000000e+00 : f32
    %10 = vector.broadcast %cst_4 : f32 to vector<16x512xf32>
    %11 = arith.addf %10, %9 : vector<16x512xf32>
    %cst_5 = arith.constant 1.000000e+00 : f32
    %12 = vector.broadcast %cst_5 : f32 to vector<16x512xf32>
    %13 = arith.divf %12, %11 : vector<16x512xf32>
    %cst_6 = arith.constant 2.000000e+00 : f32
    %14 = vector.broadcast %cst_6 : f32 to vector<16x512xf32>
    %15 = arith.mulf %14, %13 : vector<16x512xf32>
    %cst_7 = arith.constant 1.000000e+00 : f32
    %16 = vector.broadcast %cst_7 : f32 to vector<16x512xf32>
    %17 = arith.subf %15, %16 : vector<16x512xf32>
    %18 = arith.mulf %6, %17 : vector<16x512xf32>
    %c0_8 = arith.constant 0 : index
    %c0_9 = arith.constant 0 : index
    %19 = vector.load %arg5[%c0_8, %c0_9] : memref<8x512xf32, #tpu.memory_space<vmem>>, vector<8x512xf32>
    %20 = vector.shape_cast %18 : vector<16x512xf32> to vector<2x8x512xf32>
    %cst_10 = arith.constant dense<0.000000e+00> : vector<8x512xf32>
    %21 = vector.multi_reduction <add>, %20, %cst_10 [0] : vector<2x8x512xf32> to vector<8x512xf32>
    %22 = arith.addf %19, %21 : vector<8x512xf32>
    %c0_11 = arith.constant 0 : index
    %c0_12 = arith.constant 0 : index
    %23 = vector.load %arg5[%c0_11, %c0_12] : memref<8x512xf32, #tpu.memory_space<vmem>>, vector<8x512xf32>
    tpu.vector_store %arg5[%c0_11, %c0_12], %22 {strides = array<i32>} : memref<8x512xf32, #tpu.memory_space<vmem>>, vector<8x512xf32>,
    %c0_i32_13 = arith.constant 0 : i32
    %24 = arith.cmpi eq, %arg1, %c0_i32_13 : i32
    %25 = arith.extui %24 : i1 to i32
    %c0_i32_14 = arith.constant 0 : i32
    %26 = arith.cmpi ne, %25, %c0_i32_14 : i32
    scf.if %26 {
      %c0_15 = arith.constant 0 : index
      %c0_16 = arith.constant 0 : index
      %27 = vector.load %arg5[%c0_15, %c0_16] : memref<8x512xf32, #tpu.memory_space<vmem>>, vector<8x512xf32>
      %c0_17 = arith.constant 0 : index
      %c0_18 = arith.constant 0 : index
      %c0_19 = arith.constant 0 : index
      %28 = vector.load %arg4[%c0_17, %c0_18, %c0_19] : memref<1x8x512xf32, #tpu.memory_space<vmem>>, vector<1x8x512xf32>
      %29 = vector.shape_cast %28 : vector<1x8x512xf32> to vector<8x512xf32>
      %30 = vector.shape_cast %27 : vector<8x512xf32> to vector<1x8x512xf32>
      tpu.vector_store %arg4[%c0_17, %c0_18, %c0_19], %30 {strides = array<i32>} : memref<1x8x512xf32, #tpu.memory_space<vmem>>, vector<1x8x512xf32>,
    } else {
    }
    return
  }
  func.func @transform_0(%arg0: i32, %arg1: i32) -> (i32, i32) {
    %c1_i32 = arith.constant 1 : i32
    %0 = arith.muli %arg0, %c1_i32 : i32
    %1 = arith.addi %0, %arg1 : i32
    %c0_i32 = arith.constant 0 : i32
    %c0_i32_0 = arith.constant 0 : i32
    return %1, %c0_i32 : i32, i32
  }
  func.func @transform_1(%arg0: i32, %arg1: i32) -> (i32, i32) {
    %c1_i32 = arith.constant 1 : i32
    %0 = arith.muli %arg0, %c1_i32 : i32
    %1 = arith.addi %0, %arg1 : i32
    %c0_i32 = arith.constant 0 : i32
    %c0_i32_0 = arith.constant 0 : i32
    return %1, %c0_i32 : i32, i32
  }
  func.func @transform_2(%arg0: i32, %arg1: i32) -> (i32, i32, i32) {
    %c0_i32 = arith.constant 0 : i32
    %c0_i32_0 = arith.constant 0 : i32
    %c0_i32_1 = arith.constant 0 : i32
    return %arg0, %c0_i32, %c0_i32_0 : i32, i32, i32
  }
}

</mosaic_0001>

<llo_original>
// kernel: tpu_custom_call.1
$region0: #{tpu_custom_call.1}
  #allocation0 [shape = 'u32[]', space=smem, size = 0x4, offset = 0x4, fixed_abs, tag = 'smem constant byte address 0x4 - core index']
  #allocation1 [shape = 'u32[72,128]{1,0:T(1,128)}', space=vmem, size = 0x9000, scoped, tag = 'internal scratch']
  #allocation2 [shape = 'f32[8,512]{1,0:T(8,128)}', space=vmem, size = 0x4000, scoped, tag = 'scratch operand']
  %s0 = inlined_call_operand.hbm [shape: f32[16,512], index: 0, kind: input, shape index: {}]
  %s1 = inlined_call_operand.hbm [shape: f32[16,512], index: 1, kind: input, shape index: {}]
  %s2 = inlined_call_operand.hbm [shape: f32[1,8,512], index: 2, kind: output, shape index: {}]
  %s3 = sld [smem:[#allocation0]]
  $region34: #{tpu_custom_call.1} parent=0
    _
  %s5 = ssub.s32 1, %s3
  %s6 = scalar_select 0, %s5, %s3
  $region1: #{tpu_custom_call.1} parent=0
    #allocation3 [shape = 'u8[32768]{0}', space=vmem, size = 0x8000, scoped, tag = 'input window, operand 0, single buffered']
    #allocation4 [shape = 's32[1]{0}', space=sflag, size = 0x4, scoped, tag = 'scoped memory for tpu_custom_call.1']
    #allocation5 [shape = 's32[1]{0}', space=sflag, size = 0x4, scoped, tag = 'scoped memory for tpu_custom_call.1']
    #allocation6 [shape = 'u8[32768]{0}', space=vmem, size = 0x8000, scoped, tag = 'input window, operand 1, single buffered']
    #allocation7 [shape = 's32[1]{0}', space=sflag, size = 0x4, scoped, tag = 'scoped memory for tpu_custom_call.1']
    #allocation8 [shape = 'u8[16384]{0}', space=vmem, size = 0x4000, scoped, tag = 'output window, operand 0, single buffered']
    %7 = vsyncpa [#allocation4], 0
    %8 = vsyncpa [#allocation7], 0
    %9 = vsyncpa [#allocation5], 0
    // Predicated region
    $region2: #{tpu_custom_call.1} parent=1 // pred_check
      _
    $region3: #{tpu_custom_call.1} parent=1 // pred_check_branch
      %11 = sbr.rel (0) target = $region5
    $region4: #{tpu_custom_call.1} parent=1 // pred_region
      %s12 = sadd.s32 0, 0
      %s13 = smul.u32 2, %s12
      %15 = vsyncadd [#allocation4], 0
      %s16 = smul.addr %s13, 4
      %s17 = smul.addr %s16, 8
      %s18 = scalar_lea.hbm %s0, %s17
      %s19 = sshll.u32 %s18, 4
      %s20 = int_to_ptr.hbm [resolvable:$true] %s19
      %s21 = sshll.u32 [#allocation3], 4
      %s22 = int_to_ptr.vmem [resolvable:$true] %s21
      %27 = dma.hbm_to_vmem [thread:$0]  %s20, 1024, %s22, [#allocation4], 512, 512, 32
    $region5: #{tpu_custom_call.1} parent=1 // pred_fallthru
      _
    // Predicated region
    $region6: #{tpu_custom_call.1} parent=1 // pred_check
      _
    $region7: #{tpu_custom_call.1} parent=1 // pred_check_branch
      %29 = sbr.rel (0) target = $region9
    $region8: #{tpu_custom_call.1} parent=1 // pred_region
      %s30 = sadd.s32 0, 0
      %s31 = smul.u32 2, %s30
      %33 = vsyncadd [#allocation7], 0
      %s34 = smul.addr %s31, 4
      %s35 = smul.addr %s34, 8
      %s36 = scalar_lea.hbm %s1, %s35
      %s37 = sshll.u32 %s36, 4
      %s38 = int_to_ptr.hbm [resolvable:$true] %s37
      %s39 = sshll.u32 [#allocation6], 4
      %s40 = int_to_ptr.vmem [resolvable:$true] %s39
      %45 = dma.hbm_to_vmem [thread:$0]  %s38, 1024, %s40, [#allocation7], 512, 512, 32
    $region9: #{tpu_custom_call.1} parent=1 // pred_fallthru
      _
    // Predicated region
    $region10: #{tpu_custom_call.1} parent=1 // pred_check
      _
    $region11: #{tpu_custom_call.1} parent=1 // pred_check_branch
      %47 = sbr.rel (0) target = $region13
    $region12: #{tpu_custom_call.1} parent=1 // pred_region
      %49 = dma.done [#allocation4], 1024
    $region13: #{tpu_custom_call.1} parent=1 // pred_fallthru
      _
    // Predicated region
    $region14: #{tpu_custom_call.1} parent=1 // pred_check
      _
    $region15: #{tpu_custom_call.1} parent=1 // pred_check_branch
      %51 = sbr.rel (0) target = $region17
    $region16: #{tpu_custom_call.1} parent=1 // pred_region
      %53 = dma.done [#allocation7], 1024
    $region17: #{tpu_custom_call.1} parent=1 // pred_fallthru
      _
    %s54 = sadd.s32 0, 0
    %s55 = smul.u32 2, %s54
    %s56 = sadd.s32 0, 0
    %s57 = smul.u32 2, %s56
    %p58 = scmp.eq.s32.totalorder 0, 0
    // Predicated region
    $region18: #{tpu_custom_call.1} parent=1 // pred_check
      %p59 = pneg %p58
    $region19: #{tpu_custom_call.1} parent=1 // pred_check_branch
      %61 = sbr.rel (%p59) target = $region21
    $region20: #{tpu_custom_call.1} parent=1 // pred_region
      %62 = vst [vmem:[#allocation2] sm:$0xff] 0.0
      %63 = vst [vmem:[#allocation2 + $0x8] sm:$0xff] 0.0
      %64 = vst [vmem:[#allocation2 + $0x10] sm:$0xff] 0.0
      %65 = vst [vmem:[#allocation2 + $0x18] sm:$0xff] 0.0
    $region21: #{tpu_custom_call.1} parent=1 // pred_fallthru
      _
    %v66 = vld [vmem:[#allocation3] sm:$0xff]
    %v67 = vld [vmem:[#allocation3 + $0x8] sm:$0xff]
    %v68 = vld [vmem:[#allocation3 + $0x10] sm:$0xff]
    %v69 = vld [vmem:[#allocation3 + $0x18] sm:$0xff]
    %v70 = vld [vmem:[#allocation3 + $0x20] sm:$0xff]
    %v71 = vld [vmem:[#allocation3 + $0x28] sm:$0xff]
    %v72 = vld [vmem:[#allocation3 + $0x30] sm:$0xff]
    %v73 = vld [vmem:[#allocation3 + $0x38] sm:$0xff]
    %v74 = vld [vmem:[#allocation6] sm:$0xff]
    %v75 = vld [vmem:[#allocation6 + $0x8] sm:$0xff]
    %v76 = vld [vmem:[#allocation6 + $0x10] sm:$0xff]
    %v77 = vld [vmem:[#allocation6 + $0x18] sm:$0xff]
    %v78 = vld [vmem:[#allocation6 + $0x20] sm:$0xff]
    %v79 = vld [vmem:[#allocation6 + $0x28] sm:$0xff]
    %v80 = vld [vmem:[#allocation6 + $0x30] sm:$0xff]
    %v81 = vld [vmem:[#allocation6 + $0x38] sm:$0xff]
    %v82 = vsub.f32 %v66, %v74
    %v83 = vsub.f32 %v67, %v75
    %v84 = vsub.f32 %v68, %v76
    %v85 = vsub.f32 %v69, %v77
    %v86 = vsub.f32 %v70, %v78
    %v87 = vsub.f32 %v71, %v79
    %v88 = vsub.f32 %v72, %v80
    %v89 = vsub.f32 %v73, %v81
    %v90 = vand.u32 2147483647, %v82
    %v91 = vand.u32 2147483647, %v83
    %v92 = vand.u32 2147483647, %v84
    %v93 = vand.u32 2147483647, %v85
    %v94 = vand.u32 2147483647, %v86
    %v95 = vand.u32 2147483647, %v87
    %v96 = vand.u32 2147483647, %v88
    %v97 = vand.u32 2147483647, %v89
    %v98 = vmul.f32 %v90, -0.2
    %v99 = vmul.f32 %v91, -0.2
    %v100 = vmul.f32 %v92, -0.2
    %v101 = vmul.f32 %v93, -0.2
    %v102 = vmul.f32 %v94, -0.2
    %v103 = vmul.f32 %v95, -0.2
    %v104 = vmul.f32 %v96, -0.2
    %v105 = vmul.f32 %v97, -0.2
    %v106 = vmul.f32 %v98, 1.442695
    %v107 = vpow.pop %v106
    %v108 = vmul.f32 %v99, 1.442695
    %v109 = vpow.pop %v108
    %v110 = vmul.f32 %v100, 1.442695
    %v111 = vpow.pop %v110
    %v112 = vmul.f32 %v101, 1.442695
    %v113 = vpow.pop %v112
    %v114 = vmul.f32 %v102, 1.442695
    %v115 = vpow.pop %v114
    %v116 = vmul.f32 %v103, 1.442695
    %v117 = vpow.pop %v116
    %v118 = vmul.f32 %v104, 1.442695
    %v119 = vpow.pop %v118
    %v120 = vmul.f32 %v105, 1.442695
    %v121 = vpow.pop %v120
    %v122 = vadd.f32 %v107, 1.0
    %v123 = vadd.f32 %v109, 1.0
    %v124 = vadd.f32 %v111, 1.0
    %v125 = vadd.f32 %v113, 1.0
    %v126 = vadd.f32 %v115, 1.0
    %v127 = vadd.f32 %v117, 1.0
    %v128 = vadd.f32 %v119, 1.0
    %v129 = vadd.f32 %v121, 1.0
    %v130 = vrcp.pop %v122
    %v131 = vmul.f32 %v122, %v130
    %v132 = vsub.f32 1.0, %v131
    %v133 = vmul.f32 %v130, %v132
    %v134 = vadd.f32 %v130, %v133
    %vm135 = vweird.f32 %v122
    %vm136 = vweird.f32 %v130
    %vm137 = vmor %vm135, %vm136
    %v138 = vsel %vm137, %v130, %v134
    %v139 = vand.u32 2147483647, %v122
    %vm140 = vcmp.eq.f32.partialorder %v139, 8.507059e+37
    %v141 = vand.u32 %v122, 2147483648
    %v142 = vor.u32 1.1754944e-38, %v141
    %v143 = vsel %vm140, %v142, %v138
    %v144 = vmul.f32 1.0, %v143
    %v145 = vrcp.pop %v123
    %v146 = vmul.f32 %v123, %v145
    %v147 = vsub.f32 1.0, %v146
    %v148 = vmul.f32 %v145, %v147
    %v149 = vadd.f32 %v145, %v148
    %vm150 = vweird.f32 %v123
    %vm151 = vweird.f32 %v145
    %vm152 = vmor %vm150, %vm151
    %v153 = vsel %vm152, %v145, %v149
    %v154 = vand.u32 2147483647, %v123
    %vm155 = vcmp.eq.f32.partialorder %v154, 8.507059e+37
    %v156 = vand.u32 %v123, 2147483648
    %v157 = vor.u32 1.1754944e-38, %v156
    %v158 = vsel %vm155, %v157, %v153
    %v159 = vmul.f32 1.0, %v158
    %v160 = vrcp.pop %v124
    %v161 = vmul.f32 %v124, %v160
    %v162 = vsub.f32 1.0, %v161
    %v163 = vmul.f32 %v160, %v162
    %v164 = vadd.f32 %v160, %v163
    %vm165 = vweird.f32 %v124
    %vm166 = vweird.f32 %v160
    %vm167 = vmor %vm165, %vm166
    %v168 = vsel %vm167, %v160, %v164
    %v169 = vand.u32 2147483647, %v124
    %vm170 = vcmp.eq.f32.partialorder %v169, 8.507059e+37
    %v171 = vand.u32 %v124, 2147483648
    %v172 = vor.u32 1.1754944e-38, %v171
    %v173 = vsel %vm170, %v172, %v168
    %v174 = vmul.f32 1.0, %v173
    %v175 = vrcp.pop %v125
    %v176 = vmul.f32 %v125, %v175
    %v177 = vsub.f32 1.0, %v176
    %v178 = vmul.f32 %v175, %v177
    %v179 = vadd.f32 %v175, %v178
    %vm180 = vweird.f32 %v125
    %vm181 = vweird.f32 %v175
    %vm182 = vmor %vm180, %vm181
    %v183 = vsel %vm182, %v175, %v179
    %v184 = vand.u32 2147483647, %v125
    %vm185 = vcmp.eq.f32.partialorder %v184, 8.507059e+37
    %v186 = vand.u32 %v125, 2147483648
    %v187 = vor.u32 1.1754944e-38, %v186
    %v188 = vsel %vm185, %v187, %v183
    %v189 = vmul.f32 1.0, %v188
    %v190 = vrcp.pop %v126
    %v191 = vmul.f32 %v126, %v190
    %v192 = vsub.f32 1.0, %v191
    %v193 = vmul.f32 %v190, %v192
    %v194 = vadd.f32 %v190, %v193
    %vm195 = vweird.f32 %v126
    %vm196 = vweird.f32 %v190
    %vm197 = vmor %vm195, %vm196
    %v198 = vsel %vm197, %v190, %v194
    %v199 = vand.u32 2147483647, %v126
    %vm200 = vcmp.eq.f32.partialorder %v199, 8.507059e+37
    %v201 = vand.u32 %v126, 2147483648
    %v202 = vor.u32 1.1754944e-38, %v201
    %v203 = vsel %vm200, %v202, %v198
    %v204 = vmul.f32 1.0, %v203
    %v205 = vrcp.pop %v127
    %v206 = vmul.f32 %v127, %v205
    %v207 = vsub.f32 1.0, %v206
    %v208 = vmul.f32 %v205, %v207
    %v209 = vadd.f32 %v205, %v208
    %vm210 = vweird.f32 %v127
    %vm211 = vweird.f32 %v205
    %vm212 = vmor %vm210, %vm211
    %v213 = vsel %vm212, %v205, %v209
    %v214 = vand.u32 2147483647, %v127
    %vm215 = vcmp.eq.f32.partialorder %v214, 8.507059e+37
    %v216 = vand.u32 %v127, 2147483648
    %v217 = vor.u32 1.1754944e-38, %v216
    %v218 = vsel %vm215, %v217, %v213
    %v219 = vmul.f32 1.0, %v218
    %v220 = vrcp.pop %v128
    %v221 = vmul.f32 %v128, %v220
    %v222 = vsub.f32 1.0, %v221
    %v223 = vmul.f32 %v220, %v222
    %v224 = vadd.f32 %v220, %v223
    %vm225 = vweird.f32 %v128
    %vm226 = vweird.f32 %v220
    %vm227 = vmor %vm225, %vm226
    %v228 = vsel %vm227, %v220, %v224
    %v229 = vand.u32 2147483647, %v128
    %vm230 = vcmp.eq.f32.partialorder %v229, 8.507059e+37
    %v231 = vand.u32 %v128, 2147483648
    %v232 = vor.u32 1.1754944e-38, %v231
    %v233 = vsel %vm230, %v232, %v228
    %v234 = vmul.f32 1.0, %v233
    %v235 = vrcp.pop %v129
    %v236 = vmul.f32 %v129, %v235
    %v237 = vsub.f32 1.0, %v236
    %v238 = vmul.f32 %v235, %v237
    %v239 = vadd.f32 %v235, %v238
    %vm240 = vweird.f32 %v129
    %vm241 = vweird.f32 %v235
    %vm242 = vmor %vm240, %vm241
    %v243 = vsel %vm242, %v235, %v239
    %v244 = vand.u32 2147483647, %v129
    %vm245 = vcmp.eq.f32.partialorder %v244, 8.507059e+37
    %v246 = vand.u32 %v129, 2147483648
    %v247 = vor.u32 1.1754944e-38, %v246
    %v248 = vsel %vm245, %v247, %v243
    %v249 = vmul.f32 1.0, %v248
    %v250 = vmul.f32 %v144, 2.0
    %v251 = vmul.f32 %v159, 2.0
    %v252 = vmul.f32 %v174, 2.0
    %v253 = vmul.f32 %v189, 2.0
    %v254 = vmul.f32 %v204, 2.0
    %v255 = vmul.f32 %v219, 2.0
    %v256 = vmul.f32 %v234, 2.0
    %v257 = vmul.f32 %v249, 2.0
    %v258 = vsub.f32 %v250, 1.0
    %v259 = vsub.f32 %v251, 1.0
    %v260 = vsub.f32 %v252, 1.0
    %v261 = vsub.f32 %v253, 1.0
    %v262 = vsub.f32 %v254, 1.0
    %v263 = vsub.f32 %v255, 1.0
    %v264 = vsub.f32 %v256, 1.0
    %v265 = vsub.f32 %v257, 1.0
    %v266 = vmul.f32 %v90, %v258
    %v267 = vmul.f32 %v91, %v259
    %v268 = vmul.f32 %v92, %v260
    %v269 = vmul.f32 %v93, %v261
    %v270 = vmul.f32 %v94, %v262
    %v271 = vmul.f32 %v95, %v263
    %v272 = vmul.f32 %v96, %v264
    %v273 = vmul.f32 %v97, %v265
    %v274 = vld [vmem:[#allocation2] sm:$0xff]
    %v275 = vld [vmem:[#allocation2 + $0x8] sm:$0xff]
    %v276 = vld [vmem:[#allocation2 + $0x10] sm:$0xff]
    %v277 = vld [vmem:[#allocation2 + $0x18] sm:$0xff]
    %v278 = vadd.f32 %v266, %v270
    %v279 = vadd.f32 %v267, %v271
    %v280 = vadd.f32 %v268, %v272
    %v281 = vadd.f32 %v269, %v273
    %v282 = vadd.f32 %v274, %v278
    %v283 = vadd.f32 %v275, %v279
    %v284 = vadd.f32 %v276, %v280
    %v285 = vadd.f32 %v277, %v281
    %286 = vst [vmem:[#allocation2] sm:$0xff] %v282
    %287 = vst [vmem:[#allocation2 + $0x8] sm:$0xff] %v283
    %288 = vst [vmem:[#allocation2 + $0x10] sm:$0xff] %v284
    %289 = vst [vmem:[#allocation2 + $0x18] sm:$0xff] %v285
    // Predicated region
    $region22: #{tpu_custom_call.1} parent=1 // pred_check
      %p290 = pneg %p58
    $region23: #{tpu_custom_call.1} parent=1 // pred_check_branch
      %292 = sbr.rel (%p290) target = $region25
    $region24: #{tpu_custom_call.1} parent=1 // pred_region
      %v293 = vld [vmem:[#allocation2] sm:$0xff]
      %v294 = vld [vmem:[#allocation2 + $0x8] sm:$0xff]
      %v295 = vld [vmem:[#allocation2 + $0x10] sm:$0xff]
      %v296 = vld [vmem:[#allocation2 + $0x18] sm:$0xff]
      %297 = vst [vmem:[#allocation8] sm:$0xff] %v293
      %298 = vst [vmem:[#allocation8 + $0x8] sm:$0xff] %v294
      %299 = vst [vmem:[#allocation8 + $0x10] sm:$0xff] %v295
      %300 = vst [vmem:[#allocation8 + $0x18] sm:$0xff] %v296
    $region25: #{tpu_custom_call.1} parent=1 // pred_fallthru
      _
    // Predicated region
    $region26: #{tpu_custom_call.1} parent=1 // pred_check
      _
    $region27: #{tpu_custom_call.1} parent=1 // pred_check_branch
      %302 = sbr.rel (0) target = $region29
    $region28: #{tpu_custom_call.1} parent=1 // pred_region
      %304 = vsyncadd [#allocation5], 0
      %s306 = sshll.u32 [#allocation8], 4
      %s307 = int_to_ptr.vmem [resolvable:$true] %s306
      %s308 = sshll.u32 %s2, 4
      %s309 = int_to_ptr.hbm [resolvable:$true] %s308
      %311 = dma.vmem_to_hbm [thread:$0]  %s307, 512, %s309, [#allocation5]
    $region29: #{tpu_custom_call.1} parent=1 // pred_fallthru
      _
    // Predicated region
    $region30: #{tpu_custom_call.1} parent=1 // pred_check
      _
    $region31: #{tpu_custom_call.1} parent=1 // pred_check_branch
      %313 = sbr.rel (0) target = $region33
    $region32: #{tpu_custom_call.1} parent=1 // pred_region
      %315 = dma.done [#allocation5], 512
    $region33: #{tpu_custom_call.1} parent=1 // pred_fallthru
      _
    %316 = vsyncpa [#allocation4], 1
    %317 = vsyncpa [#allocation7], 1
    %318 = vsyncpa [#allocation5], 1

</llo_original>
